<compile_context>
chip_gen: v6e
topology: v6e:2x2x1
jax: 0.10.0
libtpu: 0.0.40
codegen_flags: <defaults>
</compile_context>

<pallas_src>
import math

import jax
import jax.numpy as jnp
from jax.experimental import pallas as pl
from jax.experimental.pallas import tpu as pltpu

LANE = 128      # lane width (last dim)
SUBLANE = 8     # sublane width (second-to-last dim)


def _round_up(x, m):
    return ((x + m - 1) // m) * m


def _choose_batch_tile(B, block_m):
    """Pick a batch tile that avoids a batch-dim pad copy whenever possible."""
    if B <= block_m:
        return B                                   # single grid step
    cap = max((block_m // SUBLANE) * SUBLANE, SUBLANE)
    if B % SUBLANE == 0:
        cand = min(cap, B)
        while cand >= SUBLANE:
            if B % cand == 0:
                return cand                        # divides B: no pad needed
            cand -= SUBLANE
    return cap                                     # ragged: caller pads last tile


def _make_kernel(in_features, out_features, use_mxu_l1):
    I, O = in_features, out_features

    def kernel(x_ref, w1_ref, b1_ref, w2_ref, b2_ref, o_ref):
        x = x_ref[...]                             # (tm, I) f32
        if use_mxu_l1:
            # I is a lane multiple: aligned MXU contraction.
            h = jnp.dot(x, w1_ref[...], preferred_element_type=jnp.float32)
            h = h + b1_ref[...]
        else:
            # Small-K layer 1: I broadcast-FMAs on the VPU (statically unrolled).
            h = b1_ref[...]                        # (1, Hp) -> broadcasts up
            for k in range(I):
                h = h + x[:, k:k + 1] * w1_ref[k:k + 1, :]
        h = jnp.maximum(h, 0.0)                    # ReLU (VPU)
        # Layer 2: fully aligned (tm, Hp) @ (Hp, Op) on the MXU.
        y = jnp.dot(h, w2_ref[...], preferred_element_type=jnp.float32)
        y = jax.nn.sigmoid(y + b2_ref[...])        # EUP
        # Store only the logical O lanes (masked vst; one small store per step).
        o_ref[...] = y[:, :O].astype(o_ref.dtype)

    return kernel


def vnet_forward(x, w1p, b1p, w2p, b2p, out_features, *, block_m=1024):
    """Fused VNet forward.

    x   : (B, I)   unpadded activations (f32)
    w1p : (I, Hp), b1p: (1, Hp), w2p: (Hp, Op), b2p: (1, Op)
          hidden/output dims zero-padded to multiples of 128 at init time.
    Returns (B, out_features).
    """
    B, I = x.shape
    Hp = w1p.shape[1]
    Op = w2p.shape[1]
    O = out_features

    tm = _choose_batch_tile(B, block_m)
    Bp = _round_up(B, tm)
    if Bp != B:
        # Fallback only for awkward batch sizes; the common paths avoid this copy.
        x = jnp.pad(x, ((0, Bp - B), (0, 0)))

    grid = (Bp // tm,)
    kernel = _make_kernel(I, O, use_mxu_l1=(I % LANE == 0))

    # Honest (un-padded-activation) traffic estimate.
    cost = pl.CostEstimate(
        flops=2 * B * (I * Hp + Hp * Op),
        transcendentals=B * Op,                    # sigmoid exp
        bytes_accessed=4 * (B * I + I * Hp + Hp + Hp * Op + Op + B * O),
    )

    out = pl.pallas_call(
        kernel,
        out_shape=jax.ShapeDtypeStruct((Bp, O), x.dtype),
        grid=grid,
        in_specs=[
            # activations: tiled over batch only, feature dim left at I
            pl.BlockSpec((tm, I), lambda i: (i, 0)),
            # weights / biases: full arrays, VMEM-resident across the grid
            pl.BlockSpec((I, Hp), lambda i: (0, 0)),
            pl.BlockSpec((1, Hp), lambda i: (0, 0)),
            pl.BlockSpec((Hp, Op), lambda i: (0, 0)),
            pl.BlockSpec((1, Op), lambda i: (0, 0)),
        ],
        # logical-width output: no padded writeback, no wrapper slice
        out_specs=pl.BlockSpec((tm, O), lambda i: (i, 0)),
        compiler_params=pltpu.CompilerParams(
            dimension_semantics=("parallel",),
        ),
        cost_estimate=cost,
    )(x, w1p, b1p, w2p, b2p)

    if Bp != B:
        out = out[:B]
    return out


def init_vnet_params(key, in_features, hidden, out_features, dtype=jnp.float32):
    """PyTorch nn.Linear-style init (kaiming_uniform(a=sqrt(5)) -> U(+-1/sqrt(fan_in))).
    Weights are stored pre-transposed as (in, out); biases as (1, out)."""
    k1, k2, k3, k4 = jax.random.split(key, 4)

    bound1 = 1.0 / math.sqrt(in_features)
    w1 = jax.random.uniform(k1, (in_features, hidden), dtype, -bound1, bound1)
    b1 = jax.random.uniform(k2, (1, hidden), dtype, -bound1, bound1)

    bound2 = 1.0 / math.sqrt(hidden)
    w2 = jax.random.uniform(k3, (hidden, out_features), dtype, -bound2, bound2)
    b2 = jax.random.uniform(k4, (1, out_features), dtype, -bound2, bound2)
    return w1, b1, w2, b2


def pad_vnet_params(w1, b1, w2, b2):
    """Zero-pad the hidden and output dims to lane multiples once, at init.
    The input-feature dim is intentionally NOT padded (activations stay (B, I))."""
    I, H = w1.shape
    O = w2.shape[1]
    Hp, Op = _round_up(H, LANE), _round_up(O, LANE)
    w1p = jnp.pad(w1, ((0, 0), (0, Hp - H)))
    b1p = jnp.pad(b1, ((0, 0), (0, Hp - H)))
    w2p = jnp.pad(w2, ((0, Hp - H), (0, Op - O)))
    b2p = jnp.pad(b2, ((0, 0), (0, Op - O)))
    return w1p, b1p, w2p, b2p


if __name__ == "__main__":
    # Small shapes consistent with VNet(input, hidden, output).
    batch, in_features, hidden, out_features = 8, 4, 32, 2

    key = jax.random.PRNGKey(0)
    kx, kp, kb = jax.random.split(key, 3)

    x = jax.random.normal(kx, (batch, in_features), dtype=jnp.float32)
    w1, b1, w2, b2 = init_vnet_params(kp, in_features, hidden, out_features)
    w1p, b1p, w2p, b2p = pad_vnet_params(w1, b1, w2, b2)

    # Small-batch call (tm = B, single grid step, no pad copies anywhere).
    out = vnet_forward(x, w1p, b1p, w2p, b2p, out_features)
    out = jax.block_until_ready(out)

    ref = jax.nn.sigmoid(jnp.maximum(x @ w1 + b1, 0.0) @ w2 + b2)
    assert out.shape == (batch, out_features)
    assert jnp.allclose(out, ref, atol=1e-5, rtol=1e-5)

    # Larger-batch call: B=2048, block_m=1024 -> grid=(2,). Two "parallel"
    # steps feed both TensorCores on v7x; on single-TC v5e/v6e the extra step
    # costs ~0.35 us. No batch or feature pad copies are made.
    big_batch = 2048
    xb = jax.random.normal(kb, (big_batch, in_features), dtype=jnp.float32)
    out_big = vnet_forward(xb, w1p, b1p, w2p, b2p, out_features, block_m=1024)
    out_big = jax.block_until_ready(out_big)
    ref_big = jax.nn.sigmoid(jnp.maximum(xb @ w1 + b1, 0.0) @ w2 + b2)
    assert out_big.shape == (big_batch, out_features)
    assert jnp.allclose(out_big, ref_big, atol=1e-5, rtol=1e-5)

    print("KERNEL_OK")
</pallas_src>

<mosaic_0001>
module attributes {stable_mosaic.version = 11 : i64} {
  func.func @kernel(%arg0: i32, %arg1: memref<8x4xf32, #tpu.memory_space<vmem>>, %arg2: memref<4x128xf32, #tpu.memory_space<vmem>>, %arg3: memref<1x128xf32, #tpu.memory_space<vmem>>, %arg4: memref<128x128xf32, #tpu.memory_space<vmem>>, %arg5: memref<1x128xf32, #tpu.memory_space<vmem>>, %arg6: memref<8x2xf32, #tpu.memory_space<vmem>>) attributes {dimension_semantics = [#tpu.dimension_semantics<parallel>], iteration_bounds = array<i64: 1>, scalar_prefetch = 0 : i64, scratch_operands = 0 : i64, tpu.core_type = #tpu.core_type<tc>, window_params = [{transform_indices = @transform_0, window_bounds = array<i64: 8, 4>}, {pipeline_mode = #tpu.pipeline_mode<synchronous>, transform_indices = @transform_1, window_bounds = array<i64: 4, 128>}, {pipeline_mode = #tpu.pipeline_mode<synchronous>, transform_indices = @transform_2, window_bounds = array<i64: 1, 128>}, {pipeline_mode = #tpu.pipeline_mode<synchronous>, transform_indices = @transform_3, window_bounds = array<i64: 128, 128>}, {pipeline_mode = #tpu.pipeline_mode<synchronous>, transform_indices = @transform_4, window_bounds = array<i64: 1, 128>}, {transform_indices = @transform_5, window_bounds = array<i64: 8, 2>}]} {
    %c0 = arith.constant 0 : index
    %c0_0 = arith.constant 0 : index
    %0 = vector.load %arg1[%c0, %c0_0] : memref<8x4xf32, #tpu.memory_space<vmem>>, vector<8x4xf32>
    %c0_1 = arith.constant 0 : index
    %c0_2 = arith.constant 0 : index
    %1 = vector.load %arg3[%c0_1, %c0_2] : memref<1x128xf32, #tpu.memory_space<vmem>>, vector<1x128xf32>
    %2 = vector.extract_strided_slice %0 {offsets = [0, 0], sizes = [8, 1], strides = [1, 1]} : vector<8x4xf32> to vector<8x1xf32>
    %c0_3 = arith.constant 0 : index
    %c0_4 = arith.constant 0 : index
    %3 = vector.load %arg2[%c0_3, %c0_4] : memref<4x128xf32, #tpu.memory_space<vmem>>, vector<1x128xf32>
    %4 = vector.broadcast %2 : vector<8x1xf32> to vector<8x128xf32>
    %5 = vector.broadcast %3 : vector<1x128xf32> to vector<8x128xf32>
    %6 = arith.mulf %4, %5 : vector<8x128xf32>
    %7 = vector.broadcast %1 : vector<1x128xf32> to vector<8x128xf32>
    %8 = arith.addf %7, %6 : vector<8x128xf32>
    %9 = vector.extract_strided_slice %0 {offsets = [0, 1], sizes = [8, 1], strides = [1, 1]} : vector<8x4xf32> to vector<8x1xf32>
    %c1 = arith.constant 1 : index
    %c0_5 = arith.constant 0 : index
    %10 = vector.load %arg2[%c1, %c0_5] : memref<4x128xf32, #tpu.memory_space<vmem>>, vector<1x128xf32>
    %11 = vector.broadcast %9 : vector<8x1xf32> to vector<8x128xf32>
    %12 = vector.broadcast %10 : vector<1x128xf32> to vector<8x128xf32>
    %13 = arith.mulf %11, %12 : vector<8x128xf32>
    %14 = arith.addf %8, %13 : vector<8x128xf32>
    %15 = vector.extract_strided_slice %0 {offsets = [0, 2], sizes = [8, 1], strides = [1, 1]} : vector<8x4xf32> to vector<8x1xf32>
    %c2 = arith.constant 2 : index
    %c0_6 = arith.constant 0 : index
    %16 = vector.load %arg2[%c2, %c0_6] : memref<4x128xf32, #tpu.memory_space<vmem>>, vector<1x128xf32>
    %17 = vector.broadcast %15 : vector<8x1xf32> to vector<8x128xf32>
    %18 = vector.broadcast %16 : vector<1x128xf32> to vector<8x128xf32>
    %19 = arith.mulf %17, %18 : vector<8x128xf32>
    %20 = arith.addf %14, %19 : vector<8x128xf32>
    %21 = vector.extract_strided_slice %0 {offsets = [0, 3], sizes = [8, 1], strides = [1, 1]} : vector<8x4xf32> to vector<8x1xf32>
    %c3 = arith.constant 3 : index
    %c0_7 = arith.constant 0 : index
    %22 = vector.load %arg2[%c3, %c0_7] : memref<4x128xf32, #tpu.memory_space<vmem>>, vector<1x128xf32>
    %23 = vector.broadcast %21 : vector<8x1xf32> to vector<8x128xf32>
    %24 = vector.broadcast %22 : vector<1x128xf32> to vector<8x128xf32>
    %25 = arith.mulf %23, %24 : vector<8x128xf32>
    %26 = arith.addf %20, %25 : vector<8x128xf32>
    %cst = arith.constant 0.000000e+00 : f32
    %27 = vector.broadcast %cst : f32 to vector<8x128xf32>
    %28 = arith.maximumf %26, %27 : vector<8x128xf32>
    %c0_8 = arith.constant 0 : index
    %c0_9 = arith.constant 0 : index
    %29 = vector.load %arg4[%c0_8, %c0_9] : memref<128x128xf32, #tpu.memory_space<vmem>>, vector<128x128xf32>
    %cst_10 = arith.constant dense<0.000000e+00> : vector<8x128xf32>
    %30 = tpu.matmul %28, %29, %cst_10 {dimension_numbers = #tpu.dot_dimension_numbers<[1], [0], [0], [1], [0, 0, 1, 1], [], []>} : vector<8x128xf32>, vector<128x128xf32>, vector<8x128xf32> -> vector<8x128xf32>
    %c0_11 = arith.constant 0 : index
    %c0_12 = arith.constant 0 : index
    %31 = vector.load %arg5[%c0_11, %c0_12] : memref<1x128xf32, #tpu.memory_space<vmem>>, vector<1x128xf32>
    %32 = vector.broadcast %31 : vector<1x128xf32> to vector<8x128xf32>
    %33 = arith.addf %30, %32 : vector<8x128xf32>
    %34 = arith.negf %33 : vector<8x128xf32>
    %35 = math.exp %34 : vector<8x128xf32>
    %cst_13 = arith.constant 1.000000e+00 : f32
    %36 = vector.broadcast %cst_13 : f32 to vector<8x128xf32>
    %37 = arith.addf %36, %35 : vector<8x128xf32>
    %38 = arith.divf %36, %37 : vector<8x128xf32>
    %39 = vector.extract_strided_slice %38 {offsets = [0, 0], sizes = [8, 2], strides = [1, 1]} : vector<8x128xf32> to vector<8x2xf32>
    %c0_14 = arith.constant 0 : index
    %c0_15 = arith.constant 0 : index
    %40 = vector.load %arg6[%c0_14, %c0_15] : memref<8x2xf32, #tpu.memory_space<vmem>>, vector<8x2xf32>
    tpu.vector_store %arg6[%c0_14, %c0_15], %39 {strides = array<i32>} : memref<8x2xf32, #tpu.memory_space<vmem>>, vector<8x2xf32>,
    return
  }
  func.func @transform_0(%arg0: i32) -> (i32, i32) {
    %c0_i32 = arith.constant 0 : i32
    %c0_i32_0 = arith.constant 0 : i32
    return %arg0, %c0_i32 : i32, i32
  }
  func.func @transform_1(%arg0: i32) -> (i32, i32) {
    %c0_i32 = arith.constant 0 : i32
    %c0_i32_0 = arith.constant 0 : i32
    %c0_i32_1 = arith.constant 0 : i32
    return %c0_i32, %c0_i32_0 : i32, i32
  }
  func.func @transform_2(%arg0: i32) -> (i32, i32) {
    %c0_i32 = arith.constant 0 : i32
    %c0_i32_0 = arith.constant 0 : i32
    %c0_i32_1 = arith.constant 0 : i32
    return %c0_i32, %c0_i32_0 : i32, i32
  }
  func.func @transform_3(%arg0: i32) -> (i32, i32) {
    %c0_i32 = arith.constant 0 : i32
    %c0_i32_0 = arith.constant 0 : i32
    %c0_i32_1 = arith.constant 0 : i32
    return %c0_i32, %c0_i32_0 : i32, i32
  }
  func.func @transform_4(%arg0: i32) -> (i32, i32) {
    %c0_i32 = arith.constant 0 : i32
    %c0_i32_0 = arith.constant 0 : i32
    %c0_i32_1 = arith.constant 0 : i32
    return %c0_i32, %c0_i32_0 : i32, i32
  }
  func.func @transform_5(%arg0: i32) -> (i32, i32) {
    %c0_i32 = arith.constant 0 : i32
    %c0_i32_0 = arith.constant 0 : i32
    return %arg0, %c0_i32 : i32, i32
  }
}

</mosaic_0001>

<llo_original>
// kernel: tpu_custom_call.1
$region0: #{tpu_custom_call.1}
  #allocation0 [shape = 'u32[]', space=smem, size = 0x4, offset = 0x4, fixed_abs, tag = 'smem constant byte address 0x4 - core index']
  #allocation1 [shape = 'u32[144,128]{1,0:T(1,128)}', space=vmem, size = 0x12000, scoped, tag = 'internal scratch']
  %s0 = inlined_call_operand.vmem [shape: f32[8,4], index: 0, kind: input, shape index: {}]
  %s1 = inlined_call_operand.vmem [shape: f32[4,128], index: 1, kind: input, shape index: {}]
  %s2 = inlined_call_operand.vmem [shape: f32[1,128], index: 2, kind: input, shape index: {}]
  %s3 = inlined_call_operand.hbm [shape: f32[128,128], index: 3, kind: input, shape index: {}]
  %s4 = inlined_call_operand.vmem [shape: f32[1,128], index: 4, kind: input, shape index: {}]
  %s5 = inlined_call_operand.vmem [shape: f32[8,2], index: 5, kind: output, shape index: {}]
  %s6 = sld [smem:[#allocation0]]
  $region34: #{tpu_custom_call.1} parent=0
    _
  %s8 = ssub.s32 1, %s6
  %s9 = scalar_select 0, %s8, %s6
  $region1: #{tpu_custom_call.1} parent=0
    #allocation2 [shape = 'u8[65536]{0}', space=vmem, size = 0x10000, scoped, tag = 'input window, operand 3, single buffered']
    #allocation3 [shape = 's32[1]{0}', space=sflag, size = 0x4, scoped, tag = 'scoped memory for tpu_custom_call.1']
    %10 = vsyncpa [#allocation3], 0
    // Predicated region
    $region2: #{tpu_custom_call.1} parent=1 // pred_check
      _
    $region3: #{tpu_custom_call.1} parent=1 // pred_check_branch
      %12 = sbr.rel (0) target = $region5
    $region4: #{tpu_custom_call.1} parent=1 // pred_region
      _
    $region5: #{tpu_custom_call.1} parent=1 // pred_fallthru
      _
    // Predicated region
    $region6: #{tpu_custom_call.1} parent=1 // pred_check
      _
    $region7: #{tpu_custom_call.1} parent=1 // pred_check_branch
      %14 = sbr.rel (0) target = $region9
    $region8: #{tpu_custom_call.1} parent=1 // pred_region
      _
    $region9: #{tpu_custom_call.1} parent=1 // pred_fallthru
      _
    // Predicated region
    $region10: #{tpu_custom_call.1} parent=1 // pred_check
      _
    $region11: #{tpu_custom_call.1} parent=1 // pred_check_branch
      %16 = sbr.rel (0) target = $region13
    $region12: #{tpu_custom_call.1} parent=1 // pred_region
      _
    $region13: #{tpu_custom_call.1} parent=1 // pred_fallthru
      _
    // Predicated region
    $region14: #{tpu_custom_call.1} parent=1 // pred_check
      _
    $region15: #{tpu_custom_call.1} parent=1 // pred_check_branch
      %18 = sbr.rel (0) target = $region17
    $region16: #{tpu_custom_call.1} parent=1 // pred_region
      %s20 = ssub.s32 2048, 2048
      %21 = vsyncadd [#allocation3], %s20
      %s22 = sshll.u32 [#allocation2], 4
      %s23 = int_to_ptr.vmem [resolvable:$true] %s22
      %28 = dma.hbm_to_vmem [thread:$0]  %s3, 2048, %s23, [#allocation3], 128, 128, 8
    $region17: #{tpu_custom_call.1} parent=1 // pred_fallthru
      _
    // Predicated region
    $region18: #{tpu_custom_call.1} parent=1 // pred_check
      _
    $region19: #{tpu_custom_call.1} parent=1 // pred_check_branch
      %30 = sbr.rel (0) target = $region21
    $region20: #{tpu_custom_call.1} parent=1 // pred_region
      _
    $region21: #{tpu_custom_call.1} parent=1 // pred_fallthru
      _
    // Predicated region
    $region22: #{tpu_custom_call.1} parent=1 // pred_check
      _
    $region23: #{tpu_custom_call.1} parent=1 // pred_check_branch
      %32 = sbr.rel (0) target = $region25
    $region24: #{tpu_custom_call.1} parent=1 // pred_region
      %33 = dma.done [#allocation3], 2048
    $region25: #{tpu_custom_call.1} parent=1 // pred_fallthru
      _
    %v34 = vld [vmem:[%s0] sm:$0xff]
    %v35 = vld [vmem:[%s2] sm:$0x1]
    %v36 = vld [vmem:[%s1] sm:$0x1]
    %38 = vset.pattern.permute.xlu0 0
    %39 = vperm.xlu0 %38, %v34
    %v40 = vpop.permute.xlu0 %39
    %v42 = vlaneseq
    %v43 = vshrl.u32 %v42, 7
    %v44 = vsub.s32 0, %v43
    %v45 = vrot.slane %v36, %v44
    %v46 = vmul.f32 %v40, %v45
    %v48 = vlaneseq
    %v49 = vshrl.u32 %v48, 7
    %v50 = vsub.s32 0, %v49
    %v51 = vrot.slane %v35, %v50
    %v53 = vadd.f32 %v51, %v46
    %v54 = vld [vmem:[%s1 + $0x1] sm:$0x1]
    %55 = vset.pattern.permute.xlu0 1
    %56 = vperm.xlu0 %55, %v34
    %v57 = vpop.permute.xlu0 %56
    %v59 = vlaneseq
    %v60 = vshrl.u32 %v59, 7
    %v61 = vsub.s32 0, %v60
    %v62 = vrot.slane %v54, %v61
    %v63 = vmul.f32 %v57, %v62
    %v64 = vadd.f32 %v53, %v63
    %v65 = vld [vmem:[%s1 + $0x2] sm:$0x1]
    %66 = vset.pattern.permute.xlu0 2
    %67 = vperm.xlu0 %66, %v34
    %v68 = vpop.permute.xlu0 %67
    %v70 = vlaneseq
    %v71 = vshrl.u32 %v70, 7
    %v72 = vsub.s32 0, %v71
    %v73 = vrot.slane %v65, %v72
    %v74 = vmul.f32 %v68, %v73
    %v75 = vadd.f32 %v64, %v74
    %v76 = vld [vmem:[%s1 + $0x3] sm:$0x1]
    %77 = vset.pattern.permute.xlu0 3
    %78 = vperm.xlu0 %77, %v34
    %v79 = vpop.permute.xlu0 %78
    %v81 = vlaneseq
    %v82 = vshrl.u32 %v81, 7
    %v83 = vsub.s32 0, %v82
    %v84 = vrot.slane %v76, %v83
    %v85 = vmul.f32 %v79, %v84
    %v86 = vadd.f32 %v75, %v85
    %v87 = vmax.f32 %v86, 0.0
    %v88 = vld [vmem:[#allocation2] sm:$0xff]
    %v89 = vld [vmem:[#allocation2 + $0x8] sm:$0xff]
    %v90 = vld [vmem:[#allocation2 + $0x10] sm:$0xff]
    %v91 = vld [vmem:[#allocation2 + $0x18] sm:$0xff]
    %v92 = vld [vmem:[#allocation2 + $0x20] sm:$0xff]
    %v93 = vld [vmem:[#allocation2 + $0x28] sm:$0xff]
    %v94 = vld [vmem:[#allocation2 + $0x30] sm:$0xff]
    %v95 = vld [vmem:[#allocation2 + $0x38] sm:$0xff]
    %v96 = vld [vmem:[#allocation2 + $0x40] sm:$0xff]
    %v97 = vld [vmem:[#allocation2 + $0x48] sm:$0xff]
    %v98 = vld [vmem:[#allocation2 + $0x50] sm:$0xff]
    %v99 = vld [vmem:[#allocation2 + $0x58] sm:$0xff]
    %v100 = vld [vmem:[#allocation2 + $0x60] sm:$0xff]
    %v101 = vld [vmem:[#allocation2 + $0x68] sm:$0xff]
    %v102 = vld [vmem:[#allocation2 + $0x70] sm:$0xff]
    %v103 = vld [vmem:[#allocation2 + $0x78] sm:$0xff]
    %v104 = vld [vmem:[%s4] sm:$0x1]
    %v106 = vlaneseq
    %v107 = vshrl.u32 %v106, 7
    %v108 = vsub.s32 0, %v107
    %v109 = vrot.slane %v104, %v108
    %111 = vmatprep.subr.mxu0 0.0
    %112 = vmatpush1.msra.mxu0 %v103
    %113 = vmatprep.subr.mxu0 0.0
    %114 = vmatpush1.msra.mxu0 %v102
    %115 = vmatprep.subr.mxu0 0.0
    %116 = vmatpush1.msra.mxu0 %v101
    %117 = vmatprep.subr.mxu0 0.0
    %118 = vmatpush1.msra.mxu0 %v100
    %119 = vmatprep.subr.mxu0 0.0
    %120 = vmatpush1.msra.mxu0 %v99
    %121 = vmatprep.subr.mxu0 0.0
    %122 = vmatpush1.msra.mxu0 %v98
    %123 = vmatprep.subr.mxu0 0.0
    %124 = vmatpush1.msra.mxu0 %v97
    %125 = vmatprep.subr.mxu0 0.0
    %126 = vmatpush1.msra.mxu0 %v96
    %127 = vmatprep.subr.mxu0 0.0
    %128 = vmatpush1.msra.mxu0 %v95
    %129 = vmatprep.subr.mxu0 0.0
    %130 = vmatpush1.msra.mxu0 %v94
    %131 = vmatprep.subr.mxu0 0.0
    %132 = vmatpush1.msra.mxu0 %v93
    %133 = vmatprep.subr.mxu0 0.0
    %134 = vmatpush1.msra.mxu0 %v92
    %135 = vmatprep.subr.mxu0 0.0
    %136 = vmatpush1.msra.mxu0 %v91
    %137 = vmatprep.subr.mxu0 0.0
    %138 = vmatpush1.msra.mxu0 %v90
    %139 = vmatprep.subr.mxu0 0.0
    %140 = vmatpush1.msra.mxu0 %v89
    %141 = vmatprep.subr.mxu0 0.0
    %142 = vmatpush1.msra.mxu0 %v88
    %143 = vmatprep.subr.mxu0 0.0
    %144 = vmatpush2.msra.mxu0 0.0
    %145 = vmatprep.subr.mxu0 0.0
    %146 = vmatpush2.msra.mxu0 0.0
    %147 = vmatprep.subr.mxu0 0.0
    %148 = vmatpush2.msra.mxu0 0.0
    %149 = vmatprep.subr.mxu0 0.0
    %150 = vmatpush2.msra.mxu0 0.0
    %151 = vmatprep.subr.mxu0 0.0
    %152 = vmatpush2.msra.mxu0 0.0
    %153 = vmatprep.subr.mxu0 0.0
    %154 = vmatpush2.msra.mxu0 0.0
    %155 = vmatprep.subr.mxu0 0.0
    %156 = vmatpush2.msra.mxu0 0.0
    %157 = vmatprep.subr.mxu0 0.0
    %158 = vmatpush2.msra.mxu0 0.0
    %159 = vmatprep.subr.mxu0 0.0
    %160 = vmatpush2.msra.mxu0 0.0
    %161 = vmatprep.subr.mxu0 0.0
    %162 = vmatpush2.msra.mxu0 0.0
    %163 = vmatprep.subr.mxu0 0.0
    %164 = vmatpush2.msra.mxu0 0.0
    %165 = vmatprep.subr.mxu0 0.0
    %166 = vmatpush2.msra.mxu0 0.0
    %167 = vmatprep.subr.mxu0 0.0
    %168 = vmatpush2.msra.mxu0 0.0
    %169 = vmatprep.subr.mxu0 0.0
    %170 = vmatpush2.msra.mxu0 0.0
    %171 = vmatprep.subr.mxu0 0.0
    %172 = vmatpush2.msra.mxu0 0.0
    %173 = vmatprep.subr.mxu0 0.0
    %174 = vmatpush2.msra.mxu0 0.0
    %175 = vmatprep.mubr.f32.mxu0 0.0
    %176 = vmatmul.mubr.f32.gmra.mxu0 %v87
    %v177 = vpop.f32.mrf.mxu0
    %v178 = vadd.f32 %v109, %v177
    %v179 = vpop.f32.mrf.mxu0
    %180 = vdwg.mxu0
    %v181 = vxor.u32 %v178, 2147483648
    %v182 = vmul.f32 %v181, 1.442695
    %v183 = vpow.pop %v182
    %v184 = vadd.f32 %v183, 1.0
    %v185 = vrcp.pop %v184
    %v186 = vmul.f32 1.0, %v185
    %vm187 = vcmask 15360
    %188 = vst.msk [vmem:[%s5] sm:$0xff] %vm187, %v186
    // Predicated region
    $region26: #{tpu_custom_call.1} parent=1 // pred_check
      _
    $region27: #{tpu_custom_call.1} parent=1 // pred_check_branch
      %190 = sbr.rel (0) target = $region29
    $region28: #{tpu_custom_call.1} parent=1 // pred_region
      _
    $region29: #{tpu_custom_call.1} parent=1 // pred_fallthru
      _
    // Predicated region
    $region30: #{tpu_custom_call.1} parent=1 // pred_check
      _
    $region31: #{tpu_custom_call.1} parent=1 // pred_check_branch
      %192 = sbr.rel (0) target = $region33
    $region32: #{tpu_custom_call.1} parent=1 // pred_region
      _
    $region33: #{tpu_custom_call.1} parent=1 // pred_fallthru
      _
    %193 = vsyncpa [#allocation3], 1

</llo_original>
